<compile_context>
chip_gen: v6e
topology: v6e:2x2x1
jax: 0.10.0
libtpu: 0.0.40
codegen_flags: <defaults>
</compile_context>

<pallas_src>
import functools

import jax
import jax.numpy as jnp
from jax import lax
from jax.experimental import pallas as pl
from jax.experimental.pallas import tpu as pltpu

EPS = 1e-5


def _round_up(x, m):
    return ((x + m - 1) // m) * m


# --------------------------------------------------------------------------
# shared compute pieces
# --------------------------------------------------------------------------
def _fc1_relu(state_ref, w1_ref, b1_ref):
    # bf16 inputs, f32 accumulation on the MXU; ReLU in f32 on the VPU.
    x1 = jnp.dot(state_ref[...], w1_ref[...],
                 preferred_element_type=jnp.float32) + b1_ref[...]
    return jnp.maximum(x1, 0.0)


def _fc2_fc3(a_dim, x1, action_ref, w2s_ref, w2a_ref, b2_ref, w3_ref, b3_ref,
             out_ref):
    # fc2 state-branch on the MXU (bf16 in, f32 acc).
    h2 = jnp.dot(x1.astype(jnp.bfloat16), w2s_ref[...],
                 preferred_element_type=jnp.float32) + b2_ref[...]
    # fc2 action-branch: K == action_size is tiny -> VPU broadcast MADs
    # instead of a degenerate MXU matmul.
    act = action_ref[...]
    w2a = w2a_ref[...]
    if a_dim <= 16:
        for k in range(a_dim):  # static unroll
            h2 = h2 + act[:, k:k + 1] * w2a[k:k + 1, :]
    else:
        h2 = h2 + jnp.dot(act, w2a, preferred_element_type=jnp.float32)
    h2 = jnp.maximum(h2, 0.0)
    # fc3 (N == 1): VPU multiply + row reduce instead of an N=1 MXU matmul.
    q = jnp.sum(h2 * w3_ref[...], axis=1, keepdims=True) + b3_ref[0]
    out_ref[...] = q.astype(out_ref.dtype)


# --------------------------------------------------------------------------
# kernels
# --------------------------------------------------------------------------
def _critic_kernel_nobn(a_dim,
                        state_ref, action_ref,
                        w1_ref, b1_ref,
                        w2s_ref, w2a_ref, b2_ref,
                        w3_ref, b3_ref,
                        out_ref):
    x1 = _fc1_relu(state_ref, w1_ref, b1_ref)
    _fc2_fc3(a_dim, x1, action_ref, w2s_ref, w2a_ref, b2_ref, w3_ref, b3_ref,
             out_ref)


def _critic_kernel_bn(a_dim, b_actual, tb, needs_mask,
                      state_ref, action_ref,
                      w1_ref, b1_ref,
                      bn_g_ref, bn_b_ref,
                      w2s_ref, w2a_ref, b2_ref,
                      w3_ref, b3_ref,
                      out_ref,
                      sum_sc, sumsq_sc, mean_sc, istd_sc):
    phase = pl.program_id(0)   # 0: accumulate BN stats, 1: normalize + fc2/fc3
    tile = pl.program_id(1)

    x1 = _fc1_relu(state_ref, w1_ref, b1_ref)

    @pl.when(jnp.logical_and(phase == 0, tile == 0))
    def _():
        sum_sc[...] = jnp.zeros_like(sum_sc)
        sumsq_sc[...] = jnp.zeros_like(sumsq_sc)

    @pl.when(phase == 0)
    def _():
        if needs_mask:
            row = tile * tb + lax.broadcasted_iota(jnp.int32, (tb, 1), 0)
            xm = jnp.where(row < b_actual, x1, 0.0)
        else:
            xm = x1
        # single-pass stats: sum and sum of squares
        sum_sc[...] = sum_sc[...] + jnp.sum(xm, axis=0, keepdims=True)
        sumsq_sc[...] = sumsq_sc[...] + jnp.sum(xm * xm, axis=0, keepdims=True)

    @pl.when(jnp.logical_and(phase == 1, tile == 0))
    def _():
        inv_b = 1.0 / float(b_actual)
        mean = sum_sc[...] * inv_b
        var = jnp.maximum(sumsq_sc[...] * inv_b - mean * mean, 0.0)  # biased var
        mean_sc[...] = mean
        istd_sc[...] = lax.rsqrt(var + EPS)

    @pl.when(phase == 1)
    def _():
        xn = (x1 - mean_sc[...]) * istd_sc[...]
        xn = xn * bn_g_ref[...] + bn_b_ref[...]
        _fc2_fc3(a_dim, xn, action_ref, w2s_ref, w2a_ref, b2_ref, w3_ref,
                 b3_ref, out_ref)


# --------------------------------------------------------------------------
# wrapper
# --------------------------------------------------------------------------
def critic_forward(state, action, params, *, normalize_batch_first_layers,
                   batch_tile=256):
    """Full Critic forward as a single Pallas TPU kernel."""
    B, S = state.shape
    A = action.shape[1]
    F1 = params["w1"].shape[1]
    F2 = params["w2s"].shape[1]

    tb = min(_round_up(batch_tile, 8), _round_up(B, 8))
    b_pad = _round_up(B, tb)
    nt = b_pad // tb

    if b_pad != B:
        state = jnp.pad(state, ((0, b_pad - B), (0, 0)))
        action = jnp.pad(action, ((0, b_pad - B), (0, 0)))

    # bf16 only on MXU operands; everything elementwise stays f32.
    state16 = state.astype(jnp.bfloat16)
    action_f32 = action.astype(jnp.float32)
    w1_16 = params["w1"].astype(jnp.bfloat16)
    w2s_16 = params["w2s"].astype(jnp.bfloat16)
    w2a = params["w2a"].astype(jnp.float32)
    b1 = params["b1"].reshape(1, F1).astype(jnp.float32)
    b2 = params["b2"].reshape(1, F2).astype(jnp.float32)
    w3row = params["w3"].reshape(1, F2).astype(jnp.float32)
    b3 = params["b3"].reshape(1).astype(jnp.float32)

    b3_spec = pl.BlockSpec(memory_space=pltpu.MemorySpace.SMEM)
    out_shape = jax.ShapeDtypeStruct((b_pad, 1), jnp.float32)

    if not normalize_batch_first_layers:
        in_specs = [
            pl.BlockSpec((tb, S), lambda i: (i, 0)),      # state  (batch-tiled)
            pl.BlockSpec((tb, A), lambda i: (i, 0)),      # action (batch-tiled)
            pl.BlockSpec((S, F1), lambda i: (0, 0)),      # w1     (resident)
            pl.BlockSpec((1, F1), lambda i: (0, 0)),      # b1
            pl.BlockSpec((F1, F2), lambda i: (0, 0)),     # w2 (state half)
            pl.BlockSpec((A, F2), lambda i: (0, 0)),      # w2 (action half)
            pl.BlockSpec((1, F2), lambda i: (0, 0)),      # b2
            pl.BlockSpec((1, F2), lambda i: (0, 0)),      # w3 as a row
            b3_spec,                                      # b3 scalar in SMEM
        ]
        out = pl.pallas_call(
            functools.partial(_critic_kernel_nobn, A),
            out_shape=out_shape,
            grid=(nt,),
            in_specs=in_specs,
            out_specs=pl.BlockSpec((tb, 1), lambda i: (i, 0)),
            compiler_params=pltpu.CompilerParams(
                dimension_semantics=("parallel",)),
        )(state16, action_f32, w1_16, b1, w2s_16, w2a, b2, w3row, b3)
    else:
        bn_g = params["bn_g"].reshape(1, F1).astype(jnp.float32)
        bn_b = params["bn_b"].reshape(1, F1).astype(jnp.float32)
        in_specs = [
            pl.BlockSpec((tb, S), lambda p, i: (i, 0)),   # state
            pl.BlockSpec((tb, A), lambda p, i: (i, 0)),   # action
            pl.BlockSpec((S, F1), lambda p, i: (0, 0)),   # w1
            pl.BlockSpec((1, F1), lambda p, i: (0, 0)),   # b1
            pl.BlockSpec((1, F1), lambda p, i: (0, 0)),   # bn gamma
            pl.BlockSpec((1, F1), lambda p, i: (0, 0)),   # bn beta
            pl.BlockSpec((F1, F2), lambda p, i: (0, 0)),  # w2 (state half)
            pl.BlockSpec((A, F2), lambda p, i: (0, 0)),   # w2 (action half)
            pl.BlockSpec((1, F2), lambda p, i: (0, 0)),   # b2
            pl.BlockSpec((1, F2), lambda p, i: (0, 0)),   # w3 row
            b3_spec,                                      # b3 scalar in SMEM
        ]
        # BN stats must span the whole batch -> both grid axes are sequential
        # ("arbitrary"); phase 0 accumulates, phase 1 consumes.
        out = pl.pallas_call(
            functools.partial(_critic_kernel_bn, A, B, tb, b_pad != B),
            out_shape=out_shape,
            grid=(2, nt),
            in_specs=in_specs,
            out_specs=pl.BlockSpec((tb, 1), lambda p, i: (i, 0)),
            scratch_shapes=[pltpu.VMEM((1, F1), jnp.float32)] * 4,
            compiler_params=pltpu.CompilerParams(
                dimension_semantics=("arbitrary", "arbitrary")),
        )(state16, action_f32, w1_16, b1, bn_g, bn_b, w2s_16, w2a, b2, w3row,
          b3)

    return out[:B] if b_pad != B else out


# --------------------------------------------------------------------------
# synthetic init mirroring Critic._initialize_weights + reference
# --------------------------------------------------------------------------
def init_params(key, state_size, action_size, fc1_units=128, fc2_units=64):
    ks = jax.random.split(key, 8)
    # hidden_init uses weight.size()[0] == out_features as "fan_in"
    lim1 = 1.0 / jnp.sqrt(float(fc1_units))
    lim2 = 1.0 / jnp.sqrt(float(fc2_units))

    # weights stored transposed: (in_features, out_features)
    w1 = jax.random.uniform(ks[0], (state_size, fc1_units), jnp.float32, -lim1, lim1)
    w2 = jax.random.uniform(ks[1], (fc1_units + action_size, fc2_units),
                            jnp.float32, -lim2, lim2)
    w3 = jax.random.uniform(ks[2], (fc2_units, 1), jnp.float32, -0.003, 0.003)

    b1 = jax.random.uniform(ks[3], (fc1_units,), jnp.float32,
                            -1.0 / jnp.sqrt(float(state_size)),
                            1.0 / jnp.sqrt(float(state_size)))
    b2 = jax.random.uniform(ks[4], (fc2_units,), jnp.float32,
                            -1.0 / jnp.sqrt(float(fc1_units + action_size)),
                            1.0 / jnp.sqrt(float(fc1_units + action_size)))
    b3 = jax.random.uniform(ks[5], (1,), jnp.float32,
                            -1.0 / jnp.sqrt(float(fc2_units)),
                            1.0 / jnp.sqrt(float(fc2_units)))

    return {
        "w1": w1, "b1": b1,
        "bn_g": jnp.ones((fc1_units,), jnp.float32),   # BatchNorm1d gamma init
        "bn_b": jnp.zeros((fc1_units,), jnp.float32),  # BatchNorm1d beta init
        "w2s": w2[:fc1_units, :],    # part multiplying x1
        "w2a": w2[fc1_units:, :],    # part multiplying action
        "b2": b2,
        "w3": w3, "b3": b3,
    }


def critic_reference(state, action, params, *, normalize_batch_first_layers):
    """Pure-JAX reference (mirrors the kernel's bf16-on-MXU casting)."""
    x1 = jnp.dot(state.astype(jnp.bfloat16), params["w1"].astype(jnp.bfloat16),
                 preferred_element_type=jnp.float32) + params["b1"]
    x1 = jnp.maximum(x1, 0.0)
    if normalize_batch_first_layers:
        mean = jnp.mean(x1, axis=0, keepdims=True)
        var = jnp.mean((x1 - mean) ** 2, axis=0, keepdims=True)
        x1 = (x1 - mean) / jnp.sqrt(var + EPS)
        x1 = x1 * params["bn_g"] + params["bn_b"]
    h2 = (jnp.dot(x1.astype(jnp.bfloat16), params["w2s"].astype(jnp.bfloat16),
                  preferred_element_type=jnp.float32)
          + action @ params["w2a"] + params["b2"])
    h2 = jnp.maximum(h2, 0.0)
    return h2 @ params["w3"] + params["b3"]


if __name__ == "__main__":
    state_size, action_size = 16, 4
    key = jax.random.PRNGKey(0)
    _, _, k_p = jax.random.split(key, 3)
    params = init_params(k_p, state_size, action_size)

    # (batch, normalize_batch_first_layers, batch_tile)
    checks = [
        (8, True, 256),   # BN on, single batch tile
        (8, False, 256),  # BN off, "parallel" batch grid
        (20, True, 8),    # BN on, 3 batch tiles + padded last tile (two-phase stats)
    ]
    for B, normalize, batch_tile in checks:
        ks, ka = jax.random.split(jax.random.fold_in(key, B), 2)
        state = jax.random.normal(ks, (B, state_size), jnp.float32)
        action = jax.random.normal(ka, (B, action_size), jnp.float32)

        out = critic_forward(state, action, params,
                             normalize_batch_first_layers=normalize,
                             batch_tile=batch_tile)
        out = jax.block_until_ready(out)

        ref = critic_reference(state, action, params,
                               normalize_batch_first_layers=normalize)
        assert out.shape == (B, 1)
        assert jnp.allclose(out, ref, atol=5e-3, rtol=5e-2), (B, normalize)

    # TODO(synk): BatchNorm eval-mode (running stats) is not modeled; the
    # kernel reproduces PyTorch's default training-mode batch statistics.
    print("KERNEL_OK")
</pallas_src>

<mosaic_0001>
module attributes {stable_mosaic.version = 11 : i64} {
  func.func @_critic_kernel_bn(%arg0: i32, %arg1: i32, %arg2: memref<8x16xbf16, #tpu.memory_space<vmem>>, %arg3: memref<8x4xf32, #tpu.memory_space<vmem>>, %arg4: memref<16x128xbf16, #tpu.memory_space<vmem>>, %arg5: memref<1x128xf32, #tpu.memory_space<vmem>>, %arg6: memref<1x128xf32, #tpu.memory_space<vmem>>, %arg7: memref<1x128xf32, #tpu.memory_space<vmem>>, %arg8: memref<128x64xbf16, #tpu.memory_space<vmem>>, %arg9: memref<4x64xf32, #tpu.memory_space<vmem>>, %arg10: memref<1x64xf32, #tpu.memory_space<vmem>>, %arg11: memref<1x64xf32, #tpu.memory_space<vmem>>, %arg12: memref<1xf32, #tpu.memory_space<smem>>, %arg13: memref<8x1xf32, #tpu.memory_space<vmem>>, %arg14: memref<1x128xf32, #tpu.memory_space<vmem>>, %arg15: memref<1x128xf32, #tpu.memory_space<vmem>>, %arg16: memref<1x128xf32, #tpu.memory_space<vmem>>, %arg17: memref<1x128xf32, #tpu.memory_space<vmem>>) attributes {dimension_semantics = [#tpu.dimension_semantics<arbitrary>, #tpu.dimension_semantics<arbitrary>], iteration_bounds = array<i64: 2, 1>, scalar_prefetch = 0 : i64, scratch_operands = 4 : i64, tpu.core_type = #tpu.core_type<tc>, window_params = [{transform_indices = @transform_0, window_bounds = array<i64: 8, 16>}, {transform_indices = @transform_1, window_bounds = array<i64: 8, 4>}, {pipeline_mode = #tpu.pipeline_mode<synchronous>, transform_indices = @transform_2, window_bounds = array<i64: 16, 128>}, {pipeline_mode = #tpu.pipeline_mode<synchronous>, transform_indices = @transform_3, window_bounds = array<i64: 1, 128>}, {pipeline_mode = #tpu.pipeline_mode<synchronous>, transform_indices = @transform_4, window_bounds = array<i64: 1, 128>}, {pipeline_mode = #tpu.pipeline_mode<synchronous>, transform_indices = @transform_5, window_bounds = array<i64: 1, 128>}, {pipeline_mode = #tpu.pipeline_mode<synchronous>, transform_indices = @transform_6, window_bounds = array<i64: 128, 64>}, {pipeline_mode = #tpu.pipeline_mode<synchronous>, transform_indices = @transform_7, window_bounds = array<i64: 4, 64>}, {pipeline_mode = #tpu.pipeline_mode<synchronous>, transform_indices = @transform_8, window_bounds = array<i64: 1, 64>}, {pipeline_mode = #tpu.pipeline_mode<synchronous>, transform_indices = @transform_9, window_bounds = array<i64: 1, 64>}, {transform_indices = @transform_10, window_bounds = array<i64: 1>}, {transform_indices = @transform_11, window_bounds = array<i64: 8, 1>}]} {
    %c0 = arith.constant 0 : index
    %c0_0 = arith.constant 0 : index
    %0 = vector.load %arg2[%c0, %c0_0] : memref<8x16xbf16, #tpu.memory_space<vmem>>, vector<8x16xbf16>
    %c0_1 = arith.constant 0 : index
    %c0_2 = arith.constant 0 : index
    %1 = vector.load %arg4[%c0_1, %c0_2] : memref<16x128xbf16, #tpu.memory_space<vmem>>, vector<16x128xbf16>
    %cst = arith.constant dense<0.000000e+00> : vector<8x128xf32>
    %2 = tpu.matmul %0, %1, %cst {dimension_numbers = #tpu.dot_dimension_numbers<[1], [0], [0], [1], [0, 0, 1, 1], [], []>} : vector<8x16xbf16>, vector<16x128xbf16>, vector<8x128xf32> -> vector<8x128xf32>
    %c0_3 = arith.constant 0 : index
    %c0_4 = arith.constant 0 : index
    %3 = vector.load %arg5[%c0_3, %c0_4] : memref<1x128xf32, #tpu.memory_space<vmem>>, vector<1x128xf32>
    %4 = vector.broadcast %3 : vector<1x128xf32> to vector<8x128xf32>
    %5 = arith.addf %2, %4 : vector<8x128xf32>
    %cst_5 = arith.constant 0.000000e+00 : f32
    %6 = vector.broadcast %cst_5 : f32 to vector<8x128xf32>
    %7 = arith.maximumf %5, %6 : vector<8x128xf32>
    %c0_i32 = arith.constant 0 : i32
    %8 = arith.cmpi eq, %arg0, %c0_i32 : i32
    %c0_i32_6 = arith.constant 0 : i32
    %9 = arith.cmpi eq, %arg1, %c0_i32_6 : i32
    %10 = arith.andi %8, %9 : i1
    %11 = arith.extui %10 : i1 to i32
    %c0_i32_7 = arith.constant 0 : i32
    %12 = arith.cmpi ne, %11, %c0_i32_7 : i32
    scf.if %12 {
      %cst_14 = arith.constant 0.000000e+00 : f32
      %24 = vector.broadcast %cst_14 : f32 to vector<1x128xf32>
      %c0_15 = arith.constant 0 : index
      %c0_16 = arith.constant 0 : index
      %25 = vector.load %arg14[%c0_15, %c0_16] : memref<1x128xf32, #tpu.memory_space<vmem>>, vector<1x128xf32>
      tpu.vector_store %arg14[%c0_15, %c0_16], %24 {strides = array<i32>} : memref<1x128xf32, #tpu.memory_space<vmem>>, vector<1x128xf32>,
      %cst_17 = arith.constant 0.000000e+00 : f32
      %26 = vector.broadcast %cst_17 : f32 to vector<1x128xf32>
      %c0_18 = arith.constant 0 : index
      %c0_19 = arith.constant 0 : index
      %27 = vector.load %arg15[%c0_18, %c0_19] : memref<1x128xf32, #tpu.memory_space<vmem>>, vector<1x128xf32>
      tpu.vector_store %arg15[%c0_18, %c0_19], %26 {strides = array<i32>} : memref<1x128xf32, #tpu.memory_space<vmem>>, vector<1x128xf32>,
    } else {
    }
    %c0_i32_8 = arith.constant 0 : i32
    %13 = arith.cmpi eq, %arg0, %c0_i32_8 : i32
    %14 = arith.extui %13 : i1 to i32
    %c0_i32_9 = arith.constant 0 : i32
    %15 = arith.cmpi ne, %14, %c0_i32_9 : i32
    scf.if %15 {
      %c0_14 = arith.constant 0 : index
      %c0_15 = arith.constant 0 : index
      %24 = vector.load %arg14[%c0_14, %c0_15] : memref<1x128xf32, #tpu.memory_space<vmem>>, vector<1x128xf32>
      %cst_16 = arith.constant dense<0.000000e+00> : vector<128xf32>
      %25 = vector.multi_reduction <add>, %7, %cst_16 [0] : vector<8x128xf32> to vector<128xf32>
      %26 = vector.shape_cast %25 : vector<128xf32> to vector<1x128xf32>
      %27 = arith.addf %24, %26 : vector<1x128xf32>
      %c0_17 = arith.constant 0 : index
      %c0_18 = arith.constant 0 : index
      %28 = vector.load %arg14[%c0_17, %c0_18] : memref<1x128xf32, #tpu.memory_space<vmem>>, vector<1x128xf32>
      tpu.vector_store %arg14[%c0_17, %c0_18], %27 {strides = array<i32>} : memref<1x128xf32, #tpu.memory_space<vmem>>, vector<1x128xf32>,
      %c0_19 = arith.constant 0 : index
      %c0_20 = arith.constant 0 : index
      %29 = vector.load %arg15[%c0_19, %c0_20] : memref<1x128xf32, #tpu.memory_space<vmem>>, vector<1x128xf32>
      %30 = arith.mulf %7, %7 : vector<8x128xf32>
      %cst_21 = arith.constant dense<0.000000e+00> : vector<128xf32>
      %31 = vector.multi_reduction <add>, %30, %cst_21 [0] : vector<8x128xf32> to vector<128xf32>
      %32 = vector.shape_cast %31 : vector<128xf32> to vector<1x128xf32>
      %33 = arith.addf %29, %32 : vector<1x128xf32>
      %c0_22 = arith.constant 0 : index
      %c0_23 = arith.constant 0 : index
      %34 = vector.load %arg15[%c0_22, %c0_23] : memref<1x128xf32, #tpu.memory_space<vmem>>, vector<1x128xf32>
      tpu.vector_store %arg15[%c0_22, %c0_23], %33 {strides = array<i32>} : memref<1x128xf32, #tpu.memory_space<vmem>>, vector<1x128xf32>,
    } else {
    }
    %c1_i32 = arith.constant 1 : i32
    %16 = arith.cmpi eq, %arg0, %c1_i32 : i32
    %c0_i32_10 = arith.constant 0 : i32
    %17 = arith.cmpi eq, %arg1, %c0_i32_10 : i32
    %18 = arith.andi %16, %17 : i1
    %19 = arith.extui %18 : i1 to i32
    %c0_i32_11 = arith.constant 0 : i32
    %20 = arith.cmpi ne, %19, %c0_i32_11 : i32
    scf.if %20 {
      %c0_14 = arith.constant 0 : index
      %c0_15 = arith.constant 0 : index
      %24 = vector.load %arg14[%c0_14, %c0_15] : memref<1x128xf32, #tpu.memory_space<vmem>>, vector<1x128xf32>
      %cst_16 = arith.constant 1.250000e-01 : f32
      %25 = vector.broadcast %cst_16 : f32 to vector<1x128xf32>
      %26 = arith.mulf %24, %25 : vector<1x128xf32>
      %c0_17 = arith.constant 0 : index
      %c0_18 = arith.constant 0 : index
      %27 = vector.load %arg15[%c0_17, %c0_18] : memref<1x128xf32, #tpu.memory_space<vmem>>, vector<1x128xf32>
      %cst_19 = arith.constant 1.250000e-01 : f32
      %28 = vector.broadcast %cst_19 : f32 to vector<1x128xf32>
      %29 = arith.mulf %27, %28 : vector<1x128xf32>
      %30 = arith.mulf %26, %26 : vector<1x128xf32>
      %31 = arith.subf %29, %30 : vector<1x128xf32>
      %cst_20 = arith.constant 0.000000e+00 : f32
      %32 = vector.broadcast %cst_20 : f32 to vector<1x128xf32>
      %33 = arith.maximumf %31, %32 : vector<1x128xf32>
      %c0_21 = arith.constant 0 : index
      %c0_22 = arith.constant 0 : index
      %34 = vector.load %arg16[%c0_21, %c0_22] : memref<1x128xf32, #tpu.memory_space<vmem>>, vector<1x128xf32>
      tpu.vector_store %arg16[%c0_21, %c0_22], %26 {strides = array<i32>} : memref<1x128xf32, #tpu.memory_space<vmem>>, vector<1x128xf32>,
      %cst_23 = arith.constant 9.99999974E-6 : f32
      %35 = vector.broadcast %cst_23 : f32 to vector<1x128xf32>
      %36 = arith.addf %33, %35 : vector<1x128xf32>
      %37 = math.rsqrt %36 : vector<1x128xf32>
      %c0_24 = arith.constant 0 : index
      %c0_25 = arith.constant 0 : index
      %38 = vector.load %arg17[%c0_24, %c0_25] : memref<1x128xf32, #tpu.memory_space<vmem>>, vector<1x128xf32>
      tpu.vector_store %arg17[%c0_24, %c0_25], %37 {strides = array<i32>} : memref<1x128xf32, #tpu.memory_space<vmem>>, vector<1x128xf32>,
    } else {
    }
    %c1_i32_12 = arith.constant 1 : i32
    %21 = arith.cmpi eq, %arg0, %c1_i32_12 : i32
    %22 = arith.extui %21 : i1 to i32
    %c0_i32_13 = arith.constant 0 : i32
    %23 = arith.cmpi ne, %22, %c0_i32_13 : i32
    scf.if %23 {
      %c0_14 = arith.constant 0 : index
      %c0_15 = arith.constant 0 : index
      %24 = vector.load %arg16[%c0_14, %c0_15] : memref<1x128xf32, #tpu.memory_space<vmem>>, vector<1x128xf32>
      %25 = vector.broadcast %24 : vector<1x128xf32> to vector<8x128xf32>
      %26 = arith.subf %7, %25 : vector<8x128xf32>
      %c0_16 = arith.constant 0 : index
      %c0_17 = arith.constant 0 : index
      %27 = vector.load %arg17[%c0_16, %c0_17] : memref<1x128xf32, #tpu.memory_space<vmem>>, vector<1x128xf32>
      %28 = vector.broadcast %27 : vector<1x128xf32> to vector<8x128xf32>
      %29 = arith.mulf %26, %28 : vector<8x128xf32>
      %c0_18 = arith.constant 0 : index
      %c0_19 = arith.constant 0 : index
      %30 = vector.load %arg6[%c0_18, %c0_19] : memref<1x128xf32, #tpu.memory_space<vmem>>, vector<1x128xf32>
      %31 = vector.broadcast %30 : vector<1x128xf32> to vector<8x128xf32>
      %32 = arith.mulf %29, %31 : vector<8x128xf32>
      %c0_20 = arith.constant 0 : index
      %c0_21 = arith.constant 0 : index
      %33 = vector.load %arg7[%c0_20, %c0_21] : memref<1x128xf32, #tpu.memory_space<vmem>>, vector<1x128xf32>
      %34 = vector.broadcast %33 : vector<1x128xf32> to vector<8x128xf32>
      %35 = arith.addf %32, %34 : vector<8x128xf32>
      %36 = arith.truncf %35 : vector<8x128xf32> to vector<8x128xbf16>
      %c0_22 = arith.constant 0 : index
      %c0_23 = arith.constant 0 : index
      %37 = vector.load %arg8[%c0_22, %c0_23] : memref<128x64xbf16, #tpu.memory_space<vmem>>, vector<128x64xbf16>
      %cst_24 = arith.constant dense<0.000000e+00> : vector<8x64xf32>
      %38 = tpu.matmul %36, %37, %cst_24 {dimension_numbers = #tpu.dot_dimension_numbers<[1], [0], [0], [1], [0, 0, 1, 1], [], []>} : vector<8x128xbf16>, vector<128x64xbf16>, vector<8x64xf32> -> vector<8x64xf32>
      %c0_25 = arith.constant 0 : index
      %c0_26 = arith.constant 0 : index
      %39 = vector.load %arg10[%c0_25, %c0_26] : memref<1x64xf32, #tpu.memory_space<vmem>>, vector<1x64xf32>
      %40 = vector.broadcast %39 : vector<1x64xf32> to vector<8x64xf32>
      %41 = arith.addf %38, %40 : vector<8x64xf32>
      %c0_27 = arith.constant 0 : index
      %c0_28 = arith.constant 0 : index
      %42 = vector.load %arg3[%c0_27, %c0_28] : memref<8x4xf32, #tpu.memory_space<vmem>>, vector<8x4xf32>
      %c0_29 = arith.constant 0 : index
      %c0_30 = arith.constant 0 : index
      %43 = vector.load %arg9[%c0_29, %c0_30] : memref<4x64xf32, #tpu.memory_space<vmem>>, vector<4x64xf32>
      %44 = vector.extract_strided_slice %42 {offsets = [0, 0], sizes = [8, 1], strides = [1, 1]} : vector<8x4xf32> to vector<8x1xf32>
      %45 = vector.extract_strided_slice %43 {offsets = [0, 0], sizes = [1, 64], strides = [1, 1]} : vector<4x64xf32> to vector<1x64xf32>
      %46 = vector.broadcast %44 : vector<8x1xf32> to vector<8x64xf32>
      %47 = vector.broadcast %45 : vector<1x64xf32> to vector<8x64xf32>
      %48 = arith.mulf %46, %47 : vector<8x64xf32>
      %49 = arith.addf %41, %48 : vector<8x64xf32>
      %50 = vector.extract_strided_slice %42 {offsets = [0, 1], sizes = [8, 1], strides = [1, 1]} : vector<8x4xf32> to vector<8x1xf32>
      %51 = vector.extract_strided_slice %43 {offsets = [1, 0], sizes = [1, 64], strides = [1, 1]} : vector<4x64xf32> to vector<1x64xf32>
      %52 = vector.broadcast %50 : vector<8x1xf32> to vector<8x64xf32>
      %53 = vector.broadcast %51 : vector<1x64xf32> to vector<8x64xf32>
      %54 = arith.mulf %52, %53 : vector<8x64xf32>
      %55 = arith.addf %49, %54 : vector<8x64xf32>
      %56 = vector.extract_strided_slice %42 {offsets = [0, 2], sizes = [8, 1], strides = [1, 1]} : vector<8x4xf32> to vector<8x1xf32>
      %57 = vector.extract_strided_slice %43 {offsets = [2, 0], sizes = [1, 64], strides = [1, 1]} : vector<4x64xf32> to vector<1x64xf32>
      %58 = vector.broadcast %56 : vector<8x1xf32> to vector<8x64xf32>
      %59 = vector.broadcast %57 : vector<1x64xf32> to vector<8x64xf32>
      %60 = arith.mulf %58, %59 : vector<8x64xf32>
      %61 = arith.addf %55, %60 : vector<8x64xf32>
      %62 = vector.extract_strided_slice %42 {offsets = [0, 3], sizes = [8, 1], strides = [1, 1]} : vector<8x4xf32> to vector<8x1xf32>
      %63 = vector.extract_strided_slice %43 {offsets = [3, 0], sizes = [1, 64], strides = [1, 1]} : vector<4x64xf32> to vector<1x64xf32>
      %64 = vector.broadcast %62 : vector<8x1xf32> to vector<8x64xf32>
      %65 = vector.broadcast %63 : vector<1x64xf32> to vector<8x64xf32>
      %66 = arith.mulf %64, %65 : vector<8x64xf32>
      %67 = arith.addf %61, %66 : vector<8x64xf32>
      %cst_31 = arith.constant 0.000000e+00 : f32
      %68 = vector.broadcast %cst_31 : f32 to vector<8x64xf32>
      %69 = arith.maximumf %67, %68 : vector<8x64xf32>
      %c0_32 = arith.constant 0 : index
      %c0_33 = arith.constant 0 : index
      %70 = vector.load %arg11[%c0_32, %c0_33] : memref<1x64xf32, #tpu.memory_space<vmem>>, vector<1x64xf32>
      %71 = vector.broadcast %70 : vector<1x64xf32> to vector<8x64xf32>
      %72 = arith.mulf %69, %71 : vector<8x64xf32>
      %cst_34 = arith.constant dense<0.000000e+00> : vector<8xf32>
      %73 = vector.multi_reduction <add>, %72, %cst_34 [1] : vector<8x64xf32> to vector<8xf32>
      %74 = vector.shape_cast %73 : vector<8xf32> to vector<8x1xf32>
      %c0_35 = arith.constant 0 : index
      %75 = memref.load %arg12[%c0_35] : memref<1xf32, #tpu.memory_space<smem>>
      %76 = vector.broadcast %75 : f32 to vector<8x1xf32>
      %77 = arith.addf %74, %76 : vector<8x1xf32>
      %c0_36 = arith.constant 0 : index
      %c0_37 = arith.constant 0 : index
      %78 = vector.load %arg13[%c0_36, %c0_37] : memref<8x1xf32, #tpu.memory_space<vmem>>, vector<8x1xf32>
      tpu.vector_store %arg13[%c0_36, %c0_37], %77 {strides = array<i32>} : memref<8x1xf32, #tpu.memory_space<vmem>>, vector<8x1xf32>,
    } else {
    }
    return
  }
  func.func @transform_0(%arg0: i32, %arg1: i32) -> (i32, i32) {
    %c0_i32 = arith.constant 0 : i32
    %c0_i32_0 = arith.constant 0 : i32
    return %arg1, %c0_i32 : i32, i32
  }
  func.func @transform_1(%arg0: i32, %arg1: i32) -> (i32, i32) {
    %c0_i32 = arith.constant 0 : i32
    %c0_i32_0 = arith.constant 0 : i32
    return %arg1, %c0_i32 : i32, i32
  }
  func.func @transform_2(%arg0: i32, %arg1: i32) -> (i32, i32) {
    %c0_i32 = arith.constant 0 : i32
    %c0_i32_0 = arith.constant 0 : i32
    %c0_i32_1 = arith.constant 0 : i32
    return %c0_i32, %c0_i32_0 : i32, i32
  }
  func.func @transform_3(%arg0: i32, %arg1: i32) -> (i32, i32) {
    %c0_i32 = arith.constant 0 : i32
    %c0_i32_0 = arith.constant 0 : i32
    %c0_i32_1 = arith.constant 0 : i32
    return %c0_i32, %c0_i32_0 : i32, i32
  }
  func.func @transform_4(%arg0: i32, %arg1: i32) -> (i32, i32) {
    %c0_i32 = arith.constant 0 : i32
    %c0_i32_0 = arith.constant 0 : i32
    %c0_i32_1 = arith.constant 0 : i32
    return %c0_i32, %c0_i32_0 : i32, i32
  }
  func.func @transform_5(%arg0: i32, %arg1: i32) -> (i32, i32) {
    %c0_i32 = arith.constant 0 : i32
    %c0_i32_0 = arith.constant 0 : i32
    %c0_i32_1 = arith.constant 0 : i32
    return %c0_i32, %c0_i32_0 : i32, i32
  }
  func.func @transform_6(%arg0: i32, %arg1: i32) -> (i32, i32) {
    %c0_i32 = arith.constant 0 : i32
    %c0_i32_0 = arith.constant 0 : i32
    %c0_i32_1 = arith.constant 0 : i32
    return %c0_i32, %c0_i32_0 : i32, i32
  }
  func.func @transform_7(%arg0: i32, %arg1: i32) -> (i32, i32) {
    %c0_i32 = arith.constant 0 : i32
    %c0_i32_0 = arith.constant 0 : i32
    %c0_i32_1 = arith.constant 0 : i32
    return %c0_i32, %c0_i32_0 : i32, i32
  }
  func.func @transform_8(%arg0: i32, %arg1: i32) -> (i32, i32) {
    %c0_i32 = arith.constant 0 : i32
    %c0_i32_0 = arith.constant 0 : i32
    %c0_i32_1 = arith.constant 0 : i32
    return %c0_i32, %c0_i32_0 : i32, i32
  }
  func.func @transform_9(%arg0: i32, %arg1: i32) -> (i32, i32) {
    %c0_i32 = arith.constant 0 : i32
    %c0_i32_0 = arith.constant 0 : i32
    %c0_i32_1 = arith.constant 0 : i32
    return %c0_i32, %c0_i32_0 : i32, i32
  }
  func.func @transform_10(%arg0: i32, %arg1: i32) -> i32 {
    %c0_i32 = arith.constant 0 : i32
    %c0_i32_0 = arith.constant 0 : i32
    return %c0_i32 : i32
  }
  func.func @transform_11(%arg0: i32, %arg1: i32) -> (i32, i32) {
    %c0_i32 = arith.constant 0 : i32
    %c0_i32_0 = arith.constant 0 : i32
    return %arg1, %c0_i32 : i32, i32
  }
}

</mosaic_0001>

<llo_original>
// kernel: tpu_custom_call.1
$region0: #{tpu_custom_call.1}
  #allocation0 [shape = 'u32[]', space=smem, size = 0x4, offset = 0x4, fixed_abs, tag = 'smem constant byte address 0x4 - core index']
  #allocation1 [shape = 'u32[144,128]{1,0:T(1,128)}', space=vmem, size = 0x12000, scoped, tag = 'internal scratch']
  #allocation2 [shape = 'f32[1,128]{1,0:T(1,128)}', space=vmem, size = 0x200, scoped, tag = 'scratch operand']
  #allocation3 [shape = 'f32[1,128]{1,0:T(1,128)}', space=vmem, size = 0x200, scoped, tag = 'scratch operand']
  #allocation4 [shape = 'f32[1,128]{1,0:T(1,128)}', space=vmem, size = 0x200, scoped, tag = 'scratch operand']
  #allocation5 [shape = 'f32[1,128]{1,0:T(1,128)}', space=vmem, size = 0x200, scoped, tag = 'scratch operand']
  #allocation6 [shape = 'f32[1]{0:T(128)S(6)}', space=smem, size = 0x200, scoped, tag = 'scoped memory for tpu_custom_call.1']
  %s0 = inlined_call_operand.vmem [shape: bf16[8,16], index: 0, kind: input, shape index: {}]
  %s1 = inlined_call_operand.vmem [shape: f32[8,4], index: 1, kind: input, shape index: {}]
  %s2 = inlined_call_operand.vmem [shape: bf16[16,128], index: 2, kind: input, shape index: {}]
  %s3 = inlined_call_operand.vmem [shape: f32[1,128], index: 3, kind: input, shape index: {}]
  %s4 = inlined_call_operand.vmem [shape: f32[1,128], index: 4, kind: input, shape index: {}]
  %s5 = inlined_call_operand.vmem [shape: f32[1,128], index: 5, kind: input, shape index: {}]
  %s6 = inlined_call_operand.vmem [shape: bf16[128,64], index: 6, kind: input, shape index: {}]
  %s7 = inlined_call_operand.vmem [shape: f32[4,64], index: 7, kind: input, shape index: {}]
  %s8 = inlined_call_operand.vmem [shape: f32[1,64], index: 8, kind: input, shape index: {}]
  %s9 = inlined_call_operand.vmem [shape: f32[1,64], index: 9, kind: input, shape index: {}]
  %s10 = inlined_call_operand.<no memory space> [shape: f32[1], index: 10, kind: input, shape index: {}]
  %s11 = inlined_call_operand.vmem [shape: f32[8,1], index: 11, kind: output, shape index: {}]
  %s12 = sld [smem:[#allocation0]]
  $region93: #{tpu_custom_call.1} parent=0
    _
  %s14 = ssub.s32 1, %s12
  %s15 = scalar_select 0, %s14, %s12
  %16 = sst [smem:[#allocation6]] %s10
  loop: start=0, step=1, limit=4
  $region2: #{tpu_custom_call.1} parent=0 // loop_pre_header
    _
  $region3: #{tpu_custom_call.1} parent=0 // loop_header
    %s18 = sphi 0, %s22
    %p19 = scmp.ge.s32.totalorder %s18, 4
    %s25 = sphi 0, %s37
    %s26 = sphi 0, %s33
    %s27 = sphi 0, %s25
    %s28 = sphi 0, %s26
    %s29 = sphi 0, %s27
    %s30 = sphi 0, %s28
    %s40 = sphi 0, %s42
    %s43 = sphi 0, %s40
    %s44 = sphi 0, %s43
    %s60 = sphi 0, %s44
    %s66 = sphi 0, %s68
    %s69 = sphi 0, %s66
    %s70 = sphi 0, %s69
    %s86 = sphi 0, %s70
    %s90 = sphi 0, %s90
    %s92 = sphi 0, %s90
    %s93 = sphi 0, %s92
    %s107 = sphi 0, %s93
    %s111 = sphi 0, %s111
    %s113 = sphi 0, %s111
    %s114 = sphi 0, %s113
    %s128 = sphi 0, %s114
    %s132 = sphi 0, %s132
    %s134 = sphi 0, %s132
    %s135 = sphi 0, %s134
    %s149 = sphi 0, %s135
    %s153 = sphi 0, %s153
    %s155 = sphi 0, %s153
    %s156 = sphi 0, %s155
    %s170 = sphi 0, %s156
    %s174 = sphi 0, %s174
    %s176 = sphi 0, %s174
    %s177 = sphi 0, %s176
    %s191 = sphi 0, %s177
    %s195 = sphi 0, %s195
    %s197 = sphi 0, %s195
    %s198 = sphi 0, %s197
    %s212 = sphi 0, %s198
    %s216 = sphi 0, %s216
    %s218 = sphi 0, %s216
    %s219 = sphi 0, %s218
    %s233 = sphi 0, %s219
    %s237 = sphi 0, %s237
    %s239 = sphi 0, %s237
    %s240 = sphi 0, %s239
    %s254 = sphi 0, %s240
    %s258 = sphi 0, %s258
    %s260 = sphi 0, %s258
    %s261 = sphi 0, %s260
    %s275 = sphi 0, %s261
    %s281 = sphi 0, %s283
    %s284 = sphi 0, %s281
    %s285 = sphi 0, %s284
    %s301 = sphi 0, %s285
  $region4: #{tpu_custom_call.1} parent=0 // loop_header_branch
    %21 = sbr.rel (%p19) target = $region8
  $region5: #{tpu_custom_call.1} parent=0 // loop_body
    %s23 = ssub.s32 %s18, 1
    %s24 = ssub.s32 %s18, 2
    %s31 = sadd.s32 1, %s26
    %p32 = scmp.ge.s32.totalorder %s31, 1
    %s33 = scalar_select %p32, 0, %s31
    %s34 = sadd.s32 1, %s25
    %s35 = scalar_select %p32, %s34, %s25
    %p36 = scmp.ge.s32.totalorder %s35, 2
    %s37 = scalar_select %p36, 0, %s35
    %s38 = ssub.s32 %s26, %s33
    %p39 = scmp.eq.s32.totalorder %s38, 0
    %s41 = sadd.s32 %s40, 1
    %s42 = scalar_select %p39, %s40, %s41
    %p45 = pneg %p39
    %p46 = scmp.eq.s32.totalorder %s18, 1
    %p47 = por %p45, %p46
    %p48 = scmp.ne.s32.totalorder %s40, %s43
    %p49 = scmp.eq.s32.totalorder %s18, 0
    %p50 = por %p48, %p49
    %p51 = scmp.ne.s32.totalorder %s40, %s43
    %p52 = scmp.eq.s32.totalorder %s23, 1
    %p53 = por %p51, %p52
    %p54 = scmp.ne.s32.totalorder %s43, %s44
    %p55 = scmp.eq.s32.totalorder %s23, 0
    %p56 = por %p54, %p55
    %p57 = scmp.ne.s32.totalorder %s43, %s44
    %p58 = scmp.eq.s32.totalorder %s24, 1
    %p59 = por %p57, %p58
    %p61 = scmp.ne.s32.totalorder %s44, %s60
    %p62 = scmp.eq.s32.totalorder %s24, 0
    %p63 = por %p61, %p62
    %s64 = ssub.s32 %s26, %s33
    %p65 = scmp.eq.s32.totalorder %s64, 0
    %s67 = sadd.s32 %s66, 1
    %s68 = scalar_select %p65, %s66, %s67
    %p71 = pneg %p65
    %p72 = scmp.eq.s32.totalorder %s18, 1
    %p73 = por %p71, %p72
    %p74 = scmp.ne.s32.totalorder %s66, %s69
    %p75 = scmp.eq.s32.totalorder %s18, 0
    %p76 = por %p74, %p75
    %p77 = scmp.ne.s32.totalorder %s66, %s69
    %p78 = scmp.eq.s32.totalorder %s23, 1
    %p79 = por %p77, %p78
    %p80 = scmp.ne.s32.totalorder %s69, %s70
    %p81 = scmp.eq.s32.totalorder %s23, 0
    %p82 = por %p80, %p81
    %p83 = scmp.ne.s32.totalorder %s69, %s70
    %p84 = scmp.eq.s32.totalorder %s24, 1
    %p85 = por %p83, %p84
    %p87 = scmp.ne.s32.totalorder %s70, %s86
    %p88 = scmp.eq.s32.totalorder %s24, 0
    %p89 = por %p87, %p88
    %s91 = sadd.s32 %s90, 1
    %p94 = scmp.eq.s32.totalorder %s18, 1
    %p95 = scmp.ne.s32.totalorder %s90, %s92
    %p96 = scmp.eq.s32.totalorder %s18, 0
    %p97 = por %p95, %p96
    %p98 = scmp.ne.s32.totalorder %s90, %s92
    %p99 = scmp.eq.s32.totalorder %s23, 1
    %p100 = por %p98, %p99
    %p101 = scmp.ne.s32.totalorder %s92, %s93
    %p102 = scmp.eq.s32.totalorder %s23, 0
    %p103 = por %p101, %p102
    %p104 = scmp.ne.s32.totalorder %s92, %s93
    %p105 = scmp.eq.s32.totalorder %s24, 1
    %p106 = por %p104, %p105
    %p108 = scmp.ne.s32.totalorder %s93, %s107
    %p109 = scmp.eq.s32.totalorder %s24, 0
    %p110 = por %p108, %p109
    %s112 = sadd.s32 %s111, 1
    %p115 = scmp.eq.s32.totalorder %s18, 1
    %p116 = scmp.ne.s32.totalorder %s111, %s113
    %p117 = scmp.eq.s32.totalorder %s18, 0
    %p118 = por %p116, %p117
    %p119 = scmp.ne.s32.totalorder %s111, %s113
    %p120 = scmp.eq.s32.totalorder %s23, 1
    %p121 = por %p119, %p120
    %p122 = scmp.ne.s32.totalorder %s113, %s114
    %p123 = scmp.eq.s32.totalorder %s23, 0
    %p124 = por %p122, %p123
    %p125 = scmp.ne.s32.totalorder %s113, %s114
    %p126 = scmp.eq.s32.totalorder %s24, 1
    %p127 = por %p125, %p126
    %p129 = scmp.ne.s32.totalorder %s114, %s128
    %p130 = scmp.eq.s32.totalorder %s24, 0
    %p131 = por %p129, %p130
    %s133 = sadd.s32 %s132, 1
    %p136 = scmp.eq.s32.totalorder %s18, 1
    %p137 = scmp.ne.s32.totalorder %s132, %s134
    %p138 = scmp.eq.s32.totalorder %s18, 0
    %p139 = por %p137, %p138
    %p140 = scmp.ne.s32.totalorder %s132, %s134
    %p141 = scmp.eq.s32.totalorder %s23, 1
    %p142 = por %p140, %p141
    %p143 = scmp.ne.s32.totalorder %s134, %s135
    %p144 = scmp.eq.s32.totalorder %s23, 0
    %p145 = por %p143, %p144
    %p146 = scmp.ne.s32.totalorder %s134, %s135
    %p147 = scmp.eq.s32.totalorder %s24, 1
    %p148 = por %p146, %p147
    %p150 = scmp.ne.s32.totalorder %s135, %s149
    %p151 = scmp.eq.s32.totalorder %s24, 0
    %p152 = por %p150, %p151
    %s154 = sadd.s32 %s153, 1
    %p157 = scmp.eq.s32.totalorder %s18, 1
    %p158 = scmp.ne.s32.totalorder %s153, %s155
    %p159 = scmp.eq.s32.totalorder %s18, 0
    %p160 = por %p158, %p159
    %p161 = scmp.ne.s32.totalorder %s153, %s155
    %p162 = scmp.eq.s32.totalorder %s23, 1
    %p163 = por %p161, %p162
    %p164 = scmp.ne.s32.totalorder %s155, %s156
    %p165 = scmp.eq.s32.totalorder %s23, 0
    %p166 = por %p164, %p165
    %p167 = scmp.ne.s32.totalorder %s155, %s156
    %p168 = scmp.eq.s32.totalorder %s24, 1
    %p169 = por %p167, %p168
    %p171 = scmp.ne.s32.totalorder %s156, %s170
    %p172 = scmp.eq.s32.totalorder %s24, 0
    %p173 = por %p171, %p172
    %s175 = sadd.s32 %s174, 1
    %p178 = scmp.eq.s32.totalorder %s18, 1
    %p179 = scmp.ne.s32.totalorder %s174, %s176
    %p180 = scmp.eq.s32.totalorder %s18, 0
    %p181 = por %p179, %p180
    %p182 = scmp.ne.s32.totalorder %s174, %s176
    %p183 = scmp.eq.s32.totalorder %s23, 1
    %p184 = por %p182, %p183
    %p185 = scmp.ne.s32.totalorder %s176, %s177
    %p186 = scmp.eq.s32.totalorder %s23, 0
    %p187 = por %p185, %p186
    %p188 = scmp.ne.s32.totalorder %s176, %s177
    %p189 = scmp.eq.s32.totalorder %s24, 1
    %p190 = por %p188, %p189
    %p192 = scmp.ne.s32.totalorder %s177, %s191
    %p193 = scmp.eq.s32.totalorder %s24, 0
    %p194 = por %p192, %p193
    %s196 = sadd.s32 %s195, 1
    %p199 = scmp.eq.s32.totalorder %s18, 1
    %p200 = scmp.ne.s32.totalorder %s195, %s197
    %p201 = scmp.eq.s32.totalorder %s18, 0
    %p202 = por %p200, %p201
    %p203 = scmp.ne.s32.totalorder %s195, %s197
    %p204 = scmp.eq.s32.totalorder %s23, 1
    %p205 = por %p203, %p204
    %p206 = scmp.ne.s32.totalorder %s197, %s198
    %p207 = scmp.eq.s32.totalorder %s23, 0
    %p208 = por %p206, %p207
    %p209 = scmp.ne.s32.totalorder %s197, %s198
    %p210 = scmp.eq.s32.totalorder %s24, 1
    %p211 = por %p209, %p210
    %p213 = scmp.ne.s32.totalorder %s198, %s212
    %p214 = scmp.eq.s32.totalorder %s24, 0
    %p215 = por %p213, %p214
    %s217 = sadd.s32 %s216, 1
    %p220 = scmp.eq.s32.totalorder %s18, 1
    %p221 = scmp.ne.s32.totalorder %s216, %s218
    %p222 = scmp.eq.s32.totalorder %s18, 0
    %p223 = por %p221, %p222
    %p224 = scmp.ne.s32.totalorder %s216, %s218
    %p225 = scmp.eq.s32.totalorder %s23, 1
    %p226 = por %p224, %p225
    %p227 = scmp.ne.s32.totalorder %s218, %s219
    %p228 = scmp.eq.s32.totalorder %s23, 0
    %p229 = por %p227, %p228
    %p230 = scmp.ne.s32.totalorder %s218, %s219
    %p231 = scmp.eq.s32.totalorder %s24, 1
    %p232 = por %p230, %p231
    %p234 = scmp.ne.s32.totalorder %s219, %s233
    %p235 = scmp.eq.s32.totalorder %s24, 0
    %p236 = por %p234, %p235
    %s238 = sadd.s32 %s237, 1
    %p241 = scmp.eq.s32.totalorder %s18, 1
    %p242 = scmp.ne.s32.totalorder %s237, %s239
    %p243 = scmp.eq.s32.totalorder %s18, 0
    %p244 = por %p242, %p243
    %p245 = scmp.ne.s32.totalorder %s237, %s239
    %p246 = scmp.eq.s32.totalorder %s23, 1
    %p247 = por %p245, %p246
    %p248 = scmp.ne.s32.totalorder %s239, %s240
    %p249 = scmp.eq.s32.totalorder %s23, 0
    %p250 = por %p248, %p249
    %p251 = scmp.ne.s32.totalorder %s239, %s240
    %p252 = scmp.eq.s32.totalorder %s24, 1
    %p253 = por %p251, %p252
    %p255 = scmp.ne.s32.totalorder %s240, %s254
    %p256 = scmp.eq.s32.totalorder %s24, 0
    %p257 = por %p255, %p256
    %s259 = sadd.s32 %s258, 1
    %p262 = scmp.eq.s32.totalorder %s18, 1
    %p263 = scmp.ne.s32.totalorder %s258, %s260
    %p264 = scmp.eq.s32.totalorder %s18, 0
    %p265 = por %p263, %p264
    %p266 = scmp.ne.s32.totalorder %s258, %s260
    %p267 = scmp.eq.s32.totalorder %s23, 1
    %p268 = por %p266, %p267
    %p269 = scmp.ne.s32.totalorder %s260, %s261
    %p270 = scmp.eq.s32.totalorder %s23, 0
    %p271 = por %p269, %p270
    %p272 = scmp.ne.s32.totalorder %s260, %s261
    %p273 = scmp.eq.s32.totalorder %s24, 1
    %p274 = por %p272, %p273
    %p276 = scmp.ne.s32.totalorder %s261, %s275
    %p277 = scmp.eq.s32.totalorder %s24, 0
    %p278 = por %p276, %p277
    %s279 = ssub.s32 %s26, %s33
    %p280 = scmp.eq.s32.totalorder %s279, 0
    %s282 = sadd.s32 %s281, 1
    %s283 = scalar_select %p280, %s281, %s282
    %p286 = pneg %p280
    %p287 = scmp.eq.s32.totalorder %s18, 1
    %p288 = por %p286, %p287
    %p289 = scmp.ne.s32.totalorder %s281, %s284
    %p290 = scmp.eq.s32.totalorder %s18, 0
    %p291 = por %p289, %p290
    %p292 = scmp.ne.s32.totalorder %s281, %s284
    %p293 = scmp.eq.s32.totalorder %s23, 1
    %p294 = por %p292, %p293
    %p295 = scmp.ne.s32.totalorder %s284, %s285
    %p296 = scmp.eq.s32.totalorder %s23, 0
    %p297 = por %p295, %p296
    %p298 = scmp.ne.s32.totalorder %s284, %s285
    %p299 = scmp.eq.s32.totalorder %s24, 1
    %p300 = por %p298, %p299
    %p302 = scmp.ne.s32.totalorder %s285, %s301
    %p303 = scmp.eq.s32.totalorder %s24, 0
    %p304 = por %p302, %p303
    %p305 = scmp.le.s32.totalorder 1, %s18
    %p306 = scmp.lt.s32.totalorder %s18, 3
    %p307 = pnand %p305, %p306
    %p308 = pneg %p307
    // Predicated region
    $region9: #{tpu_custom_call.1} parent=5 // pred_check
      _
    $region10: #{tpu_custom_call.1} parent=5 // pred_check_branch
      %310 = sbr.rel (%p307) target = $region12
    $region11: #{tpu_custom_call.1} parent=5 // pred_region
      %s311 = ssub.s32 %s18, 1
      // Predicated region
      $region13: #{tpu_custom_call.1} parent=11 // pred_check
        %p312 = pneg %p56
      $region14: #{tpu_custom_call.1} parent=11 // pred_check_branch
        %314 = sbr.rel (%p312) target = $region16
      $region15: #{tpu_custom_call.1} parent=11 // pred_region
        %p315 = scmp.lt.s32.totalorder %s28, 0
        %s316 = scalar_select %p315, %s28, 0
        %s317 = smul.addr %s316, 4
        %s318 = scalar_lea.vmem %s0, %s317
      $region16: #{tpu_custom_call.1} parent=11 // pred_fallthru
        _
      // Predicated region
      $region17: #{tpu_custom_call.1} parent=11 // pred_check
        %p319 = pneg %p82
      $region18: #{tpu_custom_call.1} parent=11 // pred_check_branch
        %321 = sbr.rel (%p319) target = $region20
      $region19: #{tpu_custom_call.1} parent=11 // pred_region
        %p322 = scmp.lt.s32.totalorder %s28, 0
        %s323 = scalar_select %p322, %s28, 0
        %s324 = smul.addr %s323, 8
        %s325 = scalar_lea.vmem %s1, %s324
      $region20: #{tpu_custom_call.1} parent=11 // pred_fallthru
        _
      // Predicated region
      $region21: #{tpu_custom_call.1} parent=11 // pred_check
        %p326 = pneg %p103
      $region22: #{tpu_custom_call.1} parent=11 // pred_check_branch
        %328 = sbr.rel (%p326) target = $region24
      $region23: #{tpu_custom_call.1} parent=11 // pred_region
        _
      $region24: #{tpu_custom_call.1} parent=11 // pred_fallthru
        _
      // Predicated region
      $region25: #{tpu_custom_call.1} parent=11 // pred_check
        %p329 = pneg %p124
      $region26: #{tpu_custom_call.1} parent=11 // pred_check_branch
        %331 = sbr.rel (%p329) target = $region28
      $region27: #{tpu_custom_call.1} parent=11 // pred_region
        _
      $region28: #{tpu_custom_call.1} parent=11 // pred_fallthru
        _
      // Predicated region
      $region29: #{tpu_custom_call.1} parent=11 // pred_check
        %p332 = pneg %p145
      $region30: #{tpu_custom_call.1} parent=11 // pred_check_branch
        %334 = sbr.rel (%p332) target = $region32
      $region31: #{tpu_custom_call.1} parent=11 // pred_region
        _
      $region32: #{tpu_custom_call.1} parent=11 // pred_fallthru
        _
      // Predicated region
      $region33: #{tpu_custom_call.1} parent=11 // pred_check
        %p335 = pneg %p166
      $region34: #{tpu_custom_call.1} parent=11 // pred_check_branch
        %337 = sbr.rel (%p335) target = $region36
      $region35: #{tpu_custom_call.1} parent=11 // pred_region
        _
      $region36: #{tpu_custom_call.1} parent=11 // pred_fallthru
        _
      // Predicated region
      $region37: #{tpu_custom_call.1} parent=11 // pred_check
        %p338 = pneg %p187
      $region38: #{tpu_custom_call.1} parent=11 // pred_check_branch
        %340 = sbr.rel (%p338) target = $region40
      $region39: #{tpu_custom_call.1} parent=11 // pred_region
        _
      $region40: #{tpu_custom_call.1} parent=11 // pred_fallthru
        _
      // Predicated region
      $region41: #{tpu_custom_call.1} parent=11 // pred_check
        %p341 = pneg %p208
      $region42: #{tpu_custom_call.1} parent=11 // pred_check_branch
        %343 = sbr.rel (%p341) target = $region44
      $region43: #{tpu_custom_call.1} parent=11 // pred_region
        _
      $region44: #{tpu_custom_call.1} parent=11 // pred_fallthru
        _
      // Predicated region
      $region45: #{tpu_custom_call.1} parent=11 // pred_check
        %p344 = pneg %p229
      $region46: #{tpu_custom_call.1} parent=11 // pred_check_branch
        %346 = sbr.rel (%p344) target = $region48
      $region47: #{tpu_custom_call.1} parent=11 // pred_region
        _
      $region48: #{tpu_custom_call.1} parent=11 // pred_fallthru
        _
      // Predicated region
      $region49: #{tpu_custom_call.1} parent=11 // pred_check
        %p347 = pneg %p250
      $region50: #{tpu_custom_call.1} parent=11 // pred_check_branch
        %349 = sbr.rel (%p347) target = $region52
      $region51: #{tpu_custom_call.1} parent=11 // pred_region
        _
      $region52: #{tpu_custom_call.1} parent=11 // pred_fallthru
        _
      // Predicated region
      $region53: #{tpu_custom_call.1} parent=11 // pred_check
        %p350 = pneg %p271
      $region54: #{tpu_custom_call.1} parent=11 // pred_check_branch
        %352 = sbr.rel (%p350) target = $region56
      $region55: #{tpu_custom_call.1} parent=11 // pred_region
        _
      $region56: #{tpu_custom_call.1} parent=11 // pred_fallthru
        _
    $region12: #{tpu_custom_call.1} parent=5 // pred_fallthru
      _
    %p353 = scmp.lt.s32.totalorder %s18, 2
    // Predicated region
    $region57: #{tpu_custom_call.1} parent=5 // pred_check
      %p354 = pneg %p353
    $region58: #{tpu_custom_call.1} parent=5 // pred_check_branch
      %356 = sbr.rel (%p354) target = $region60
    $region59: #{tpu_custom_call.1} parent=5 // pred_region
      _
    $region60: #{tpu_custom_call.1} parent=5 // pred_fallthru
      _
    %p357 = scmp.le.s32.totalorder 1, %s18
    %p358 = scmp.lt.s32.totalorder %s18, 3
    %p359 = pnand %p357, %p358
    %p360 = pneg %p359
    // Predicated region
    $region61: #{tpu_custom_call.1} parent=5 // pred_check
      _
    $region62: #{tpu_custom_call.1} parent=5 // pred_check_branch
      %362 = sbr.rel (%p359) target = $region64
    $region63: #{tpu_custom_call.1} parent=5 // pred_region
      %s363 = ssub.s32 %s18, 1
      %p364 = scmp.lt.s32.totalorder %s28, 0
      %s365 = scalar_select %p364, %s28, 0
      %s366 = smul.addr %s365, 4
      %s367 = scalar_lea.vmem %s0, %s366
      %p368 = pneg %p56
      %p369 = pneg %p53
      %p370 = scmp.lt.s32.totalorder %s28, 0
      %s371 = scalar_select %p370, %s28, 0
      %s372 = smul.addr %s371, 8
      %s373 = scalar_lea.vmem %s1, %s372
      %p374 = pneg %p82
      %p375 = pneg %p79
      %p376 = pneg %p103
      %p377 = pneg %p100
      %p378 = pneg %p124
      %p379 = pneg %p121
      %p380 = pneg %p145
      %p381 = pneg %p142
      %p382 = pneg %p166
      %p383 = pneg %p163
      %p384 = pneg %p187
      %p385 = pneg %p184
      %p386 = pneg %p208
      %p387 = pneg %p205
      %p388 = pneg %p229
      %p389 = pneg %p226
      %p390 = pneg %p250
      %p391 = pneg %p247
      %p392 = pneg %p271
      %p393 = pneg %p268
      %p394 = pneg %p297
      %p395 = pneg %p294
      %p396 = scmp.lt.s32.totalorder %s28, 0
      %s397 = scalar_select %p396, %s28, 0
      %s398 = smul.addr %s397, 8
      %s399 = scalar_lea.vmem %s11, %s398
      %p400 = scmp.lt.s32.totalorder %s28, 0
      %s401 = scalar_select %p400, %s28, 0
      %s402 = smul.addr %s401, 4
      %s403 = scalar_lea.vmem %s0, %s402
      %p404 = scmp.lt.s32.totalorder %s28, 0
      %s405 = scalar_select %p404, %s28, 0
      %s406 = smul.addr %s405, 8
      %s407 = scalar_lea.vmem %s1, %s406
      %p408 = scmp.lt.s32.totalorder %s28, 0
      %s409 = scalar_select %p408, %s28, 0
      %s410 = smul.addr %s409, 8
      %s411 = scalar_lea.vmem %s11, %s410
      %v413 = vld [vmem:[%s403] sm:$0xf]
      %v414 = vld [vmem:[%s2] sm:$0xf]
      %v415 = vld [vmem:[%s2 + $0x4] sm:$0xf]
      %v416 = vld [vmem:[%s3] sm:$0x1]
      %v418 = vlaneseq
      %v419 = vshrl.u32 %v418, 7
      %v420 = vsub.s32 0, %v419
      %v421 = vrot.slane %v416, %v420
      %v425 = vunpack.c.l.b16 %v414
      %v426 = vunpack.c.l.b16 %v415
      %v427 = vpack.c.b16 %v426, %v425
      %vm429 = vcmask 130048
      %v431 = vsel %vm429, %v413, 0
      %433 = vmatprep.subr.bf16.mxu0 0
      %434 = vmatpush1.bf16.msra.mxu0 0
      %435 = vmatprep.subr.bf16.mxu0 0
      %436 = vmatpush1.bf16.msra.mxu0 0
      %437 = vmatprep.subr.bf16.mxu0 0
      %438 = vmatpush1.bf16.msra.mxu0 0
      %439 = vmatprep.subr.bf16.mxu0 0
      %440 = vmatpush1.bf16.msra.mxu0 0
      %441 = vmatprep.subr.bf16.mxu0 0
      %442 = vmatpush1.bf16.msra.mxu0 0
      %443 = vmatprep.subr.bf16.mxu0 0
      %444 = vmatpush1.bf16.msra.mxu0 0
      %445 = vmatprep.subr.bf16.mxu0 0
      %446 = vmatpush1.bf16.msra.mxu0 0
      %447 = vmatprep.subr.bf16.mxu0 0
      %448 = vmatpush1.bf16.msra.mxu0 %v427
      %449 = vmatprep.subr.bf16.mxu0 0
      %450 = vmatpush2.bf16.msra.mxu0 0
      %451 = vmatprep.subr.bf16.mxu0 0
      %452 = vmatpush2.bf16.msra.mxu0 0
      %453 = vmatprep.subr.bf16.mxu0 0
      %454 = vmatpush2.bf16.msra.mxu0 0
      %455 = vmatprep.subr.bf16.mxu0 0
      %456 = vmatpush2.bf16.msra.mxu0 0
      %457 = vmatprep.subr.bf16.mxu0 0
      %458 = vmatpush2.bf16.msra.mxu0 0
      %459 = vmatprep.subr.bf16.mxu0 0
      %460 = vmatpush2.bf16.msra.mxu0 0
      %461 = vmatprep.subr.bf16.mxu0 0
      %462 = vmatpush2.bf16.msra.mxu0 0
      %463 = vmatprep.subr.bf16.mxu0 0
      %464 = vmatpush2.bf16.msra.mxu0 0
      %465 = vmatprep.mubr.bf16.mxu0 0
      %466 = vmatmul.mubr.bf16.gmra.mxu0 %v431
      %v467 = vpop.f32.mrf.mxu0
      %v468 = vadd.f32 %v421, %v467
      %v469 = vpop.f32.mrf.mxu0
      %v470 = vpop.f32.mrf.mxu0
      %v471 = vpop.f32.mrf.mxu0
      %472 = vdwg.mxu0
      %v473 = vmax.f32 %v468, 0.0
      %p474 = scmp.eq.s32.totalorder %s27, 0
      %p475 = scmp.eq.s32.totalorder %s28, 0
      %p476 = pnand %p474, %p475
      %p477 = pneg %p476
      // Predicated region
      $region65: #{tpu_custom_call.1} parent=63 // pred_check
        _
      $region66: #{tpu_custom_call.1} parent=63 // pred_check_branch
        %479 = sbr.rel (%p476) target = $region68
      $region67: #{tpu_custom_call.1} parent=63 // pred_region
        %480 = vst [vmem:[#allocation2] sm:$0x1] 0.0
        %481 = vst [vmem:[#allocation3] sm:$0x1] 0.0
      $region68: #{tpu_custom_call.1} parent=63 // pred_fallthru
        _
      // Predicated region
      $region69: #{tpu_custom_call.1} parent=63 // pred_check
        %p482 = pneg %p474
      $region70: #{tpu_custom_call.1} parent=63 // pred_check_branch
        %484 = sbr.rel (%p482) target = $region72
      $region71: #{tpu_custom_call.1} parent=63 // pred_region
        %v485 = vld [vmem:[#allocation2] sm:$0x1]
        %v486 = vrot.slane %v473, 4
        %v487 = vadd.f32 %v473, %v486
        %v488 = vrot.slane %v487, 2
        %v489 = vadd.f32 %v487, %v488
        %v490 = vrot.slane %v489, 1
        %v491 = vadd.f32 %v489, %v490
        %v492 = vadd.f32 %v485, %v491
        %493 = vst [vmem:[#allocation2] sm:$0x1] %v492
        %v494 = vld [vmem:[#allocation3] sm:$0x1]
        %v495 = vmul.f32 %v473, %v473
        %v496 = vrot.slane %v495, 4
        %v497 = vadd.f32 %v495, %v496
        %v498 = vrot.slane %v497, 2
        %v499 = vadd.f32 %v497, %v498
        %v500 = vrot.slane %v499, 1
        %v501 = vadd.f32 %v499, %v500
        %v502 = vadd.f32 %v494, %v501
        %503 = vst [vmem:[#allocation3] sm:$0x1] %v502
      $region72: #{tpu_custom_call.1} parent=63 // pred_fallthru
        _
      %p504 = scmp.eq.s32.totalorder %s27, 1
      %p505 = pnand %p504, %p475
      %p506 = pneg %p505
      // Predicated region
      $region73: #{tpu_custom_call.1} parent=63 // pred_check
        _
      $region74: #{tpu_custom_call.1} parent=63 // pred_check_branch
        %508 = sbr.rel (%p505) target = $region76
      $region75: #{tpu_custom_call.1} parent=63 // pred_region
        %v509 = vld [vmem:[#allocation2] sm:$0x1]
        %v510 = vmul.f32 %v509, 0.125
        %v511 = vld [vmem:[#allocation3] sm:$0x1]
        %v512 = vmul.f32 %v511, 0.125
        %v513 = vmul.f32 %v510, %v510
        %v514 = vsub.f32 %v512, %v513
        %v515 = vmax.f32 %v514, 0.0
        %516 = vst [vmem:[#allocation4] sm:$0x1] %v510
        %v517 = vadd.f32 %v515, 1e-05
        %v518 = vrsqrt.pop %v517
        %519 = vst [vmem:[#allocation5] sm:$0x1] %v518
      $region76: #{tpu_custom_call.1} parent=63 // pred_fallthru
        _
      // Predicated region
      $region77: #{tpu_custom_call.1} parent=63 // pred_check
        %p520 = pneg %p504
      $region78: #{tpu_custom_call.1} parent=63 // pred_check_branch
        %522 = sbr.rel (%p520) target = $region80
      $region79: #{tpu_custom_call.1} parent=63 // pred_region
        %v523 = vld [vmem:[#allocation4] sm:$0x1]
        %v525 = vlaneseq
        %v526 = vshrl.u32 %v525, 7
        %v527 = vsub.s32 0, %v526
        %v528 = vrot.slane %v523, %v527
        %v530 = vsub.f32 %v473, %v528
        %v531 = vld [vmem:[#allocation5] sm:$0x1]
        %v533 = vlaneseq
        %v534 = vshrl.u32 %v533, 7
        %v535 = vsub.s32 0, %v534
        %v536 = vrot.slane %v531, %v535
        %v538 = vmul.f32 %v530, %v536
        %v539 = vld [vmem:[%s4] sm:$0x1]
        %v541 = vlaneseq
        %v542 = vshrl.u32 %v541, 7
        %v543 = vsub.s32 0, %v542
        %v544 = vrot.slane %v539, %v543
        %v546 = vmul.f32 %v538, %v544
        %v547 = vld [vmem:[%s5] sm:$0x1]
        %v549 = vlaneseq
        %v550 = vshrl.u32 %v549, 7
        %v551 = vsub.s32 0, %v550
        %v552 = vrot.slane %v547, %v551
        %v554 = vadd.f32 %v546, %v552
        %v555 = vpack.c.bf16 %v554, %v554
        %v556 = vld [vmem:[%s6] sm:$0xf]
        %v557 = vld [vmem:[%s6 + $0x4] sm:$0xf]
        %v558 = vld [vmem:[%s6 + $0x8] sm:$0xf]
        %v559 = vld [vmem:[%s6 + $0xc] sm:$0xf]
        %v560 = vld [vmem:[%s6 + $0x10] sm:$0xf]
        %v561 = vld [vmem:[%s6 + $0x14] sm:$0xf]
        %v562 = vld [vmem:[%s6 + $0x18] sm:$0xf]
        %v563 = vld [vmem:[%s6 + $0x1c] sm:$0xf]
        %v564 = vld [vmem:[%s6 + $0x20] sm:$0xf]
        %v565 = vld [vmem:[%s6 + $0x24] sm:$0xf]
        %v566 = vld [vmem:[%s6 + $0x28] sm:$0xf]
        %v567 = vld [vmem:[%s6 + $0x2c] sm:$0xf]
        %v568 = vld [vmem:[%s6 + $0x30] sm:$0xf]
        %v569 = vld [vmem:[%s6 + $0x34] sm:$0xf]
        %v570 = vld [vmem:[%s6 + $0x38] sm:$0xf]
        %v571 = vld [vmem:[%s6 + $0x3c] sm:$0xf]
        %v572 = vld [vmem:[%s8] sm:$0x1]
        %v574 = vlaneseq
        %v575 = vshrl.u32 %v574, 7
        %v576 = vsub.s32 0, %v575
        %v577 = vrot.slane %v572, %v576
        %v595 = vunpack.c.l.b16 %v556
        %v596 = vunpack.c.l.b16 %v557
        %v597 = vunpack.c.l.b16 %v558
        %v598 = vunpack.c.l.b16 %v559
        %v599 = vunpack.c.l.b16 %v560
        %v600 = vunpack.c.l.b16 %v561
        %v601 = vunpack.c.l.b16 %v562
        %v602 = vunpack.c.l.b16 %v563
        %v603 = vunpack.c.l.b16 %v564
        %v604 = vunpack.c.l.b16 %v565
        %v605 = vunpack.c.l.b16 %v566
        %v606 = vunpack.c.l.b16 %v567
        %v607 = vunpack.c.l.b16 %v568
        %v608 = vunpack.c.l.b16 %v569
        %v609 = vunpack.c.l.b16 %v570
        %v610 = vunpack.c.l.b16 %v571
        %v611 = vpack.c.b16 %v596, %v595
        %v612 = vpack.c.b16 %v598, %v597
        %v613 = vpack.c.b16 %v600, %v599
        %v614 = vpack.c.b16 %v602, %v601
        %v615 = vpack.c.b16 %v604, %v603
        %v616 = vpack.c.b16 %v606, %v605
        %v617 = vpack.c.b16 %v608, %v607
        %v618 = vpack.c.b16 %v610, %v609
        %627 = vmatprep.subr.bf16.mxu0 0
        %628 = vmatpush1.bf16.msra.mxu0 %v618
        %629 = vmatprep.subr.bf16.mxu0 0
        %630 = vmatpush1.bf16.msra.mxu0 %v617
        %631 = vmatprep.subr.bf16.mxu0 0
        %632 = vmatpush1.bf16.msra.mxu0 %v616
        %633 = vmatprep.subr.bf16.mxu0 0
        %634 = vmatpush1.bf16.msra.mxu0 %v615
        %635 = vmatprep.subr.bf16.mxu0 0
        %636 = vmatpush1.bf16.msra.mxu0 %v614
        %637 = vmatprep.subr.bf16.mxu0 0
        %638 = vmatpush1.bf16.msra.mxu0 %v613
        %639 = vmatprep.subr.bf16.mxu0 0
        %640 = vmatpush1.bf16.msra.mxu0 %v612
        %641 = vmatprep.subr.bf16.mxu0 0
        %642 = vmatpush1.bf16.msra.mxu0 %v611
        %643 = vmatprep.subr.bf16.mxu0 0
        %644 = vmatpush2.bf16.msra.mxu0 0
        %645 = vmatprep.subr.bf16.mxu0 0
        %646 = vmatpush2.bf16.msra.mxu0 0
        %647 = vmatprep.subr.bf16.mxu0 0
        %648 = vmatpush2.bf16.msra.mxu0 0
        %649 = vmatprep.subr.bf16.mxu0 0
        %650 = vmatpush2.bf16.msra.mxu0 0
        %651 = vmatprep.subr.bf16.mxu0 0
        %652 = vmatpush2.bf16.msra.mxu0 0
        %653 = vmatprep.subr.bf16.mxu0 0
        %654 = vmatpush2.bf16.msra.mxu0 0
        %655 = vmatprep.subr.bf16.mxu0 0
        %656 = vmatpush2.bf16.msra.mxu0 0
        %657 = vmatprep.subr.bf16.mxu0 0
        %658 = vmatpush2.bf16.msra.mxu0 0
        %659 = vmatprep.mubr.bf16.mxu0 0
        %660 = vmatmul.mubr.bf16.gmra.mxu0 %v555
        %v661 = vpop.f32.mrf.mxu0
        %v662 = vadd.f32 %v577, %v661
        %v663 = vpop.f32.mrf.mxu0
        %v664 = vpop.f32.mrf.mxu0
        %v665 = vpop.f32.mrf.mxu0
        %666 = vdwg.mxu0
        %v667 = vld [vmem:[%s407] sm:$0xff]
        %v668 = vld [vmem:[%s7] sm:$0xf]
        %670 = vset.pattern.permute.xlu0 0
        %671 = vperm.xlu0 %670, %v667
        %v672 = vpop.permute.xlu0 %671
        %v674 = vlaneseq
        %v675 = vshrl.u32 %v674, 7
        %v676 = vsub.s32 0, %v675
        %v677 = vrot.slane %v668, %v676
        %v678 = vmul.f32 %v672, %v677
        %v679 = vadd.f32 %v662, %v678
        %680 = vset.pattern.permute.xlu0 1
        %681 = vperm.xlu0 %680, %v667
        %v682 = vpop.permute.xlu0 %681
        %v684 = vlaneseq
        %v685 = vshrl.u32 %v684, 7
        %v686 = vsub.s32 1, %v685
        %v687 = vrot.slane %v668, %v686
        %v688 = vmul.f32 %v682, %v687
        %v689 = vadd.f32 %v679, %v688
        %690 = vset.pattern.permute.xlu0 2
        %691 = vperm.xlu0 %690, %v667
        %v692 = vpop.permute.xlu0 %691
        %v694 = vlaneseq
        %v695 = vshrl.u32 %v694, 7
        %v696 = vsub.s32 2, %v695
        %v697 = vrot.slane %v668, %v696
        %v698 = vmul.f32 %v692, %v697
        %v699 = vadd.f32 %v689, %v698
        %700 = vset.pattern.permute.xlu0 3
        %701 = vperm.xlu0 %700, %v667
        %v702 = vpop.permute.xlu0 %701
        %v704 = vlaneseq
        %v705 = vshrl.u32 %v704, 7
        %v706 = vsub.s32 3, %v705
        %v707 = vrot.slane %v668, %v706
        %v708 = vmul.f32 %v702, %v707
        %v709 = vadd.f32 %v699, %v708
        %v710 = vmax.f32 %v709, 0.0
        %v711 = vld [vmem:[%s9] sm:$0x1]
        %v713 = vlaneseq
        %v714 = vshrl.u32 %v713, 7
        %v715 = vsub.s32 0, %v714
        %v716 = vrot.slane %v711, %v715
        %v718 = vmul.f32 %v710, %v716
        %vm719 = vcmask 523264
        %v720 = vsel %vm719, %v718, 0.0
        %721 = vadd.xlane.f32.xlu0 %v720
        %v722 = vpop.xlane.xlu0 %721
        %s723 = sld [smem:[#allocation6]]
        %v724 = vstv %s723
        %v725 = vadd.f32 %v722, %v724
        %vm726 = vcmask 7168
        %727 = vst.msk [vmem:[%s411] sm:$0xff] %vm726, %v725
      $region80: #{tpu_custom_call.1} parent=63 // pred_fallthru
        _
      %p728 = scmp.lt.s32.totalorder %s28, 0
      %s729 = scalar_select %p728, %s28, 0
      %s730 = smul.addr %s729, 8
      %s731 = scalar_lea.vmem %s11, %s730
      // Predicated region
      $region81: #{tpu_custom_call.1} parent=63 // pred_check
        %p732 = pneg %p294
      $region82: #{tpu_custom_call.1} parent=63 // pred_check_branch
        %734 = sbr.rel (%p732) target = $region84
      $region83: #{tpu_custom_call.1} parent=63 // pred_region
        _
      $region84: #{tpu_custom_call.1} parent=63 // pred_fallthru
        _
      // Predicated region
      $region85: #{tpu_custom_call.1} parent=63 // pred_check
        %p735 = pneg %p294
      $region86: #{tpu_custom_call.1} parent=63 // pred_check_branch
        %737 = sbr.rel (%p735) target = $region88
      $region87: #{tpu_custom_call.1} parent=63 // pred_region
        %p738 = scmp.lt.s32.totalorder %s28, 0
        %s739 = scalar_select %p738, %s28, 0
        %s740 = smul.addr %s739, 8
        %s741 = scalar_lea.vmem %s11, %s740
      $region88: #{tpu_custom_call.1} parent=63 // pred_fallthru
        _
    $region64: #{tpu_custom_call.1} parent=5 // pred_fallthru
      _
    %p742 = scmp.le.s32.totalorder 2, %s18
    // Predicated region
    $region89: #{tpu_custom_call.1} parent=5 // pred_check
      %p743 = pneg %p742
    $region90: #{tpu_custom_call.1} parent=5 // pred_check_branch
      %745 = sbr.rel (%p743) target = $region92
    $region91: #{tpu_custom_call.1} parent=5 // pred_region
      %s746 = ssub.s32 %s18, 2
    $region92: #{tpu_custom_call.1} parent=5 // pred_fallthru
      _
  $region6: #{tpu_custom_call.1} parent=0 // loop_footer
    %s22 = sadd.s32 1, %s18
  $region7: #{tpu_custom_call.1} parent=0 // loop_footer_branch
    %17 = sbr.rel target = $region3
  $region8: #{tpu_custom_call.1} parent=0 // loop_exit
    _

</llo_original>
